<compile_context>
chip_gen: v6e
topology: v6e:2x2x1
jax: 0.10.0
libtpu: 0.0.40
codegen_flags: <defaults>
</compile_context>

<pallas_src>
import jax
import jax.numpy as jnp
from jax.experimental import pallas as pl
from jax.experimental.pallas import tpu as pltpu

PATCH = 4
EMBED_DIM = 1024     # MambaVision-B-1K final feature width
NUM_CLASSES = 4      # nn.Linear(1024, 4)


def _round_up(v, m):
    return ((v + m - 1) // m) * m


def _pool_embed_kernel(patches_ref, w_embed_ref, pooled_ref, acc_ref):
    """One (split s, batch b, token-tile n) grid step.

    patches_ref : [tn, P]          f32  flattened 4x4 patches (zero-padded tokens)
    w_embed_ref : [P, 1024]        f32  patch-embedding weight with 1/N folded in
    pooled_ref  : [1, 1, 1, 1024]  f32  pooled (avg-pool) embedded features
    acc_ref     : [8, P]           f32  running 8-sublane token partial sums
    """
    n = pl.program_id(2)

    @pl.when(n == 0)
    def _init():
        acc_ref[...] = jnp.zeros_like(acc_ref)

    # Reduce the token tile FIRST (the avg pool commutes through the linear
    # patch embed): pairwise tree of pure VALU vreg adds down to 8 sublanes.
    tn = patches_ref.shape[0]
    parts = [patches_ref[pl.ds(g * 8, 8), :] for g in range(tn // 8)]
    while len(parts) > 1:
        nxt = [parts[i] + parts[i + 1] for i in range(0, len(parts) - 1, 2)]
        if len(parts) % 2:
            nxt.append(parts[-1])
        parts = nxt
    acc_ref[...] += parts[0]

    @pl.when(n == pl.num_programs(2) - 1)
    def _finalize():
        # TODO(synk): the pretrained MambaVision-B-1K mixer/attention stages are
        # checkpoint-defined (AutoModel.from_pretrained) and have no in-script
        # equivalent; the backbone is represented by patch-embed + global avg pool.
        pooled = jnp.sum(acc_ref[...], axis=0, keepdims=True)        # [1, P], one XLU reduce
        feats = jnp.dot(pooled, w_embed_ref[...],
                        preferred_element_type=jnp.float32)          # [1, 1024]
        pooled_ref[0, 0] = feats


def mamba_1024_forward(x, w_embed, w_fc, b_fc, *, tn_max=1024, num_splits=2):
    """x: [B, 3, H, W] NCHW float32.  Returns logits [B, 4] float32."""
    B, C, H, W = x.shape
    assert H % PATCH == 0 and W % PATCH == 0
    nH, nW = H // PATCH, W // PATCH
    N = nH * nW
    P = C * PATCH * PATCH

    # --- wrapper-side layout plumbing (fused by XLA under jit) ---------------
    # NCHW -> non-overlapping 4x4 patches: [B, N, P]
    xp = x.reshape(B, C, nH, PATCH, nW, PATCH).transpose(0, 2, 4, 1, 3, 5)
    patches = xp.reshape(B, N, P).astype(jnp.float32)

    # Token tile: multiple of 16 sublanes, capped at tn_max; the token axis is
    # split `num_splits` ways on a leading parallel grid axis (v7x megacore).
    tn = max(16, min(tn_max, _round_up(pl.cdiv(N, num_splits), 16)))
    n_tiles_split = pl.cdiv(N, num_splits * tn)
    tn = max(16, min(tn, _round_up(pl.cdiv(N, num_splits * n_tiles_split), 16)))
    n_tiles_total = num_splits * n_tiles_split
    n_pad = n_tiles_total * tn

    # Keep the contraction dim at P (no 48->128 HBM padding); zero-pad tokens and
    # flatten to [B * n_pad, P] so every (tn, P) tile is one contiguous HBM range.
    patches = jnp.pad(patches, ((0, 0), (0, n_pad - N), (0, 0)))
    patches2d = patches.reshape(B * n_pad, P)

    # Fold the average-pool 1/N into the embed weight; stays f32 (the matmul now
    # runs once per image on pooled data, so bf16 would save nothing).
    w_embed_p = w_embed.astype(jnp.float32) / float(N)

    flops = B * n_pad * P + 2 * num_splits * B * P * EMBED_DIM
    bytes_accessed = (patches2d.size * 4 + w_embed_p.size * 4
                      + num_splits * B * EMBED_DIM * 4)

    partial_pooled = pl.pallas_call(
        _pool_embed_kernel,
        out_shape=jax.ShapeDtypeStruct((num_splits, B, 1, EMBED_DIM), jnp.float32),
        grid_spec=pltpu.PrefetchScalarGridSpec(
            num_scalar_prefetch=0,
            grid=(num_splits, B, n_tiles_split),      # token (reduction) axis trailing
            in_specs=[
                pl.BlockSpec(
                    (tn, P),
                    lambda s, b, n: (b * n_tiles_total + s * n_tiles_split + n, 0)),
                # Constant-index weight: single-buffer to save a VMEM copy.
                pl.BlockSpec((P, EMBED_DIM), lambda s, b, n: (0, 0),
                             pipeline_mode=pl.Buffered(1)),
            ],
            out_specs=pl.BlockSpec((1, 1, 1, EMBED_DIM),
                                   lambda s, b, n: (s, b, 0, 0)),
            scratch_shapes=[pltpu.VMEM((8, P), jnp.float32)],
        ),
        compiler_params=pltpu.CompilerParams(
            dimension_semantics=("parallel", "parallel", "arbitrary"),
            vmem_limit_bytes=32 * 1024 * 1024,
        ),
        cost_estimate=pl.CostEstimate(flops=flops, transcendentals=0,
                                      bytes_accessed=bytes_accessed),
    )(patches2d, w_embed_p)

    # Combine the token-axis splits, then run the tiny fc head (1024 -> 4) as a
    # single batched XLA matmul (an M=1 in-kernel fc wastes MXU rows and VMEM).
    pooled = jnp.sum(partial_pooled, axis=0)[:, 0, :]                 # [B, 1024]
    return pooled @ w_fc.astype(jnp.float32) + b_fc.astype(jnp.float32)[None, :]


if __name__ == "__main__":
    key = jax.random.PRNGKey(0)
    kx, k1, k2, k3 = jax.random.split(key, 4)

    # Small, module-consistent shapes: batch=2, 3-channel image, 16x16 spatial.
    B, C, H, W = 2, 3, 16, 16
    x = jax.random.normal(kx, (B, C, H, W), dtype=jnp.float32)

    P = C * PATCH * PATCH  # 48
    # Deterministic synthetic parameters (no checkpoint load).
    w_embed = 0.02 * jax.random.normal(k1, (P, EMBED_DIM), dtype=jnp.float32)
    w_fc = 0.02 * jax.random.normal(k2, (EMBED_DIM, NUM_CLASSES), dtype=jnp.float32)
    b_fc = 0.01 * jax.random.normal(k3, (NUM_CLASSES,), dtype=jnp.float32)

    out = jax.jit(mamba_1024_forward)(x, w_embed, w_fc, b_fc)
    out = jax.block_until_ready(out)
    assert out.shape == (B, NUM_CLASSES) and out.dtype == jnp.float32

    # Pure-JAX f32 reference (kernel is f32 end-to-end -> tight tolerance).
    nH, nW = H // PATCH, W // PATCH
    xp = x.reshape(B, C, nH, PATCH, nW, PATCH).transpose(0, 2, 4, 1, 3, 5)
    patches_ref = xp.reshape(B, nH * nW, P)
    feats_ref = jnp.einsum("bnp,pe->bne", patches_ref, w_embed)
    pooled_ref = jnp.mean(feats_ref, axis=1)
    ref = pooled_ref @ w_fc + b_fc[None, :]
    assert jnp.allclose(out, ref, atol=2e-3, rtol=2e-3), \
        float(jnp.max(jnp.abs(out - ref)))

    print("KERNEL_OK")
</pallas_src>

<mosaic_0001>
module attributes {stable_mosaic.version = 11 : i64} {
  func.func @_pool_embed_kernel(%arg0: i32, %arg1: i32, %arg2: i32, %arg3: memref<16x48xf32, #tpu.memory_space<vmem>>, %arg4: memref<48x1024xf32, #tpu.memory_space<vmem>>, %arg5: memref<1x1x1x1024xf32, #tpu.memory_space<vmem>>, %arg6: memref<8x48xf32, #tpu.memory_space<vmem>>) attributes {dimension_semantics = [#tpu.dimension_semantics<parallel>, #tpu.dimension_semantics<parallel>, #tpu.dimension_semantics<arbitrary>], iteration_bounds = array<i64: 2, 2, 1>, scalar_prefetch = 0 : i64, scratch_operands = 1 : i64, tpu.core_type = #tpu.core_type<tc>, window_params = [{transform_indices = @transform_0, window_bounds = array<i64: 16, 48>}, {pipeline_mode = #tpu.pipeline_mode<synchronous>, transform_indices = @transform_1, window_bounds = array<i64: 48, 1024>}, {transform_indices = @transform_2, window_bounds = array<i64: 1, 1, 1, 1024>}]} {
    %c0_i32 = arith.constant 0 : i32
    %0 = arith.cmpi eq, %arg2, %c0_i32 : i32
    %1 = arith.extui %0 : i1 to i32
    %c0_i32_0 = arith.constant 0 : i32
    %2 = arith.cmpi ne, %1, %c0_i32_0 : i32
    scf.if %2 {
      %cst = arith.constant 0.000000e+00 : f32
      %12 = vector.broadcast %cst : f32 to vector<8x48xf32>
      %c0_9 = arith.constant 0 : index
      %c0_10 = arith.constant 0 : index
      %13 = vector.load %arg6[%c0_9, %c0_10] : memref<8x48xf32, #tpu.memory_space<vmem>>, vector<8x48xf32>
      tpu.vector_store %arg6[%c0_9, %c0_10], %12 {strides = array<i32>} : memref<8x48xf32, #tpu.memory_space<vmem>>, vector<8x48xf32>,
    } else {
    }
    %c0 = arith.constant 0 : index
    %c0_1 = arith.constant 0 : index
    %3 = vector.load %arg3[%c0, %c0_1] : memref<16x48xf32, #tpu.memory_space<vmem>>, vector<8x48xf32>
    %c8 = arith.constant 8 : index
    %c0_2 = arith.constant 0 : index
    %4 = vector.load %arg3[%c8, %c0_2] : memref<16x48xf32, #tpu.memory_space<vmem>>, vector<8x48xf32>
    %5 = arith.addf %3, %4 : vector<8x48xf32>
    %c0_3 = arith.constant 0 : index
    %c0_4 = arith.constant 0 : index
    %6 = vector.load %arg6[%c0_3, %c0_4] : memref<8x48xf32, #tpu.memory_space<vmem>>, vector<8x48xf32>
    %7 = arith.addf %6, %5 : vector<8x48xf32>
    %c0_5 = arith.constant 0 : index
    %c0_6 = arith.constant 0 : index
    %8 = vector.load %arg6[%c0_5, %c0_6] : memref<8x48xf32, #tpu.memory_space<vmem>>, vector<8x48xf32>
    tpu.vector_store %arg6[%c0_5, %c0_6], %7 {strides = array<i32>} : memref<8x48xf32, #tpu.memory_space<vmem>>, vector<8x48xf32>,
    %c0_i32_7 = arith.constant 0 : i32
    %9 = arith.cmpi eq, %arg2, %c0_i32_7 : i32
    %10 = arith.extui %9 : i1 to i32
    %c0_i32_8 = arith.constant 0 : i32
    %11 = arith.cmpi ne, %10, %c0_i32_8 : i32
    scf.if %11 {
      %c0_9 = arith.constant 0 : index
      %c0_10 = arith.constant 0 : index
      %12 = vector.load %arg6[%c0_9, %c0_10] : memref<8x48xf32, #tpu.memory_space<vmem>>, vector<8x48xf32>
      %cst = arith.constant dense<0.000000e+00> : vector<48xf32>
      %13 = vector.multi_reduction <add>, %12, %cst [0] : vector<8x48xf32> to vector<48xf32>
      %14 = vector.shape_cast %13 : vector<48xf32> to vector<1x48xf32>
      %c0_11 = arith.constant 0 : index
      %c0_12 = arith.constant 0 : index
      %15 = vector.load %arg4[%c0_11, %c0_12] : memref<48x1024xf32, #tpu.memory_space<vmem>>, vector<48x1024xf32>
      %cst_13 = arith.constant dense<0.000000e+00> : vector<1x1024xf32>
      %16 = tpu.matmul %14, %15, %cst_13 {dimension_numbers = #tpu.dot_dimension_numbers<[1], [0], [0], [1], [0, 0, 1, 1], [], []>} : vector<1x48xf32>, vector<48x1024xf32>, vector<1x1024xf32> -> vector<1x1024xf32>
      %c0_14 = arith.constant 0 : index
      %c0_15 = arith.constant 0 : index
      %c0_16 = arith.constant 0 : index
      %c0_17 = arith.constant 0 : index
      %17 = vector.load %arg5[%c0_14, %c0_15, %c0_16, %c0_17] : memref<1x1x1x1024xf32, #tpu.memory_space<vmem>>, vector<1x1x1x1024xf32>
      %18 = vector.shape_cast %17 : vector<1x1x1x1024xf32> to vector<1x1024xf32>
      %19 = vector.shape_cast %16 : vector<1x1024xf32> to vector<1x1x1x1024xf32>
      tpu.vector_store %arg5[%c0_14, %c0_15, %c0_16, %c0_17], %19 {strides = array<i32>} : memref<1x1x1x1024xf32, #tpu.memory_space<vmem>>, vector<1x1x1x1024xf32>,
    } else {
    }
    return
  }
  func.func @transform_0(%arg0: i32, %arg1: i32, %arg2: i32) -> (i32, i32) {
    %c2_i32 = arith.constant 2 : i32
    %0 = arith.muli %arg1, %c2_i32 : i32
    %c1_i32 = arith.constant 1 : i32
    %1 = arith.muli %arg0, %c1_i32 : i32
    %2 = arith.addi %0, %1 : i32
    %3 = arith.addi %2, %arg2 : i32
    %c0_i32 = arith.constant 0 : i32
    %c0_i32_0 = arith.constant 0 : i32
    return %3, %c0_i32 : i32, i32
  }
  func.func @transform_1(%arg0: i32, %arg1: i32, %arg2: i32) -> (i32, i32) {
    %c0_i32 = arith.constant 0 : i32
    %c0_i32_0 = arith.constant 0 : i32
    %c0_i32_1 = arith.constant 0 : i32
    return %c0_i32, %c0_i32_0 : i32, i32
  }
  func.func @transform_2(%arg0: i32, %arg1: i32, %arg2: i32) -> (i32, i32, i32, i32) {
    %c0_i32 = arith.constant 0 : i32
    %c0_i32_0 = arith.constant 0 : i32
    %c0_i32_1 = arith.constant 0 : i32
    return %arg0, %arg1, %c0_i32, %c0_i32_0 : i32, i32, i32, i32
  }
}

</mosaic_0001>

<llo_original>
// kernel: mamba_1024_forward.1
$region0: #{mamba_1024_forward.1}
  #allocation0 [shape = 'u32[]', space=smem, size = 0x4, offset = 0x4, fixed_abs, tag = 'smem constant byte address 0x4 - core index']
  #allocation1 [shape = 'u32[144,128]{1,0:T(1,128)}', space=vmem, size = 0x12000, scoped, tag = 'internal scratch']
  #allocation2 [shape = 'f32[8,48]{1,0:T(8,128)}', space=vmem, size = 0x1000, scoped, tag = 'scratch operand']
  %s0 = inlined_call_operand.vmem [shape: f32[64,48], index: 0, kind: input, shape index: {}]
  %s1 = inlined_call_operand.vmem [shape: f32[48,1024], index: 1, kind: input, shape index: {}]
  %s2 = inlined_call_operand.vmem [shape: f32[2,2,1,1024], index: 2, kind: output, shape index: {}]
  %s3 = sld [smem:[#allocation0]]
  $region49: #{mamba_1024_forward.1} parent=0
    _
  %s5 = ssub.s32 1, %s3
  %s6 = scalar_select 0, %s5, %s3
  loop: start=0, step=1, limit=6
  $region2: #{mamba_1024_forward.1} parent=0 // loop_pre_header
    _
  $region3: #{mamba_1024_forward.1} parent=0 // loop_header
    %s8 = sphi 0, %s12
    %p9 = scmp.ge.s32.totalorder %s8, 6
    %s15 = sphi 0, %s34
    %s16 = sphi 0, %s30
    %s17 = sphi 0, %s26
    %s18 = sphi 0, %s15
    %s19 = sphi 0, %s16
    %s20 = sphi 0, %s17
    %s21 = sphi 0, %s18
    %s22 = sphi 0, %s19
    %s23 = sphi 0, %s20
    %s43 = sphi 0, %s45
    %s46 = sphi 0, %s43
    %s47 = sphi 0, %s46
    %s63 = sphi 0, %s47
    %s67 = sphi 0, %s67
    %s69 = sphi 0, %s67
    %s70 = sphi 0, %s69
    %s84 = sphi 0, %s70
    %s92 = sphi 0, %s94
    %s95 = sphi 0, %s92
    %s96 = sphi 0, %s95
    %s112 = sphi 0, %s96
  $region4: #{mamba_1024_forward.1} parent=0 // loop_header_branch
    %11 = sbr.rel (%p9) target = $region8
  $region5: #{mamba_1024_forward.1} parent=0 // loop_body
    %s13 = ssub.s32 %s8, 1
    %s14 = ssub.s32 %s8, 2
    %s24 = sadd.s32 1, %s17
    %p25 = scmp.ge.s32.totalorder %s24, 1
    %s26 = scalar_select %p25, 0, %s24
    %s27 = sadd.s32 1, %s16
    %s28 = scalar_select %p25, %s27, %s16
    %p29 = scmp.ge.s32.totalorder %s28, 2
    %s30 = scalar_select %p29, 0, %s28
    %s31 = sadd.s32 1, %s15
    %s32 = scalar_select %p29, %s31, %s15
    %p33 = scmp.ge.s32.totalorder %s32, 2
    %s34 = scalar_select %p33, 0, %s32
    %s35 = smul.u32 %s16, 2
    %s36 = sadd.s32 %s35, %s15
    %s37 = sadd.s32 %s36, %s17
    %s38 = smul.u32 %s30, 2
    %s39 = sadd.s32 %s38, %s34
    %s40 = sadd.s32 %s39, %s26
    %s41 = ssub.s32 %s37, %s40
    %p42 = scmp.eq.s32.totalorder %s41, 0
    %s44 = sadd.s32 %s43, 1
    %s45 = scalar_select %p42, %s43, %s44
    %p48 = pneg %p42
    %p49 = scmp.eq.s32.totalorder %s8, 3
    %p50 = por %p48, %p49
    %p51 = scmp.ne.s32.totalorder %s43, %s46
    %p52 = scmp.eq.s32.totalorder %s8, 0
    %p53 = por %p51, %p52
    %p54 = scmp.ne.s32.totalorder %s43, %s46
    %p55 = scmp.eq.s32.totalorder %s13, 3
    %p56 = por %p54, %p55
    %p57 = scmp.ne.s32.totalorder %s46, %s47
    %p58 = scmp.eq.s32.totalorder %s13, 0
    %p59 = por %p57, %p58
    %p60 = scmp.ne.s32.totalorder %s46, %s47
    %p61 = scmp.eq.s32.totalorder %s14, 3
    %p62 = por %p60, %p61
    %p64 = scmp.ne.s32.totalorder %s47, %s63
    %p65 = scmp.eq.s32.totalorder %s14, 0
    %p66 = por %p64, %p65
    %s68 = sadd.s32 %s67, 1
    %p71 = scmp.eq.s32.totalorder %s8, 3
    %p72 = scmp.ne.s32.totalorder %s67, %s69
    %p73 = scmp.eq.s32.totalorder %s8, 0
    %p74 = por %p72, %p73
    %p75 = scmp.ne.s32.totalorder %s67, %s69
    %p76 = scmp.eq.s32.totalorder %s13, 3
    %p77 = por %p75, %p76
    %p78 = scmp.ne.s32.totalorder %s69, %s70
    %p79 = scmp.eq.s32.totalorder %s13, 0
    %p80 = por %p78, %p79
    %p81 = scmp.ne.s32.totalorder %s69, %s70
    %p82 = scmp.eq.s32.totalorder %s14, 3
    %p83 = por %p81, %p82
    %p85 = scmp.ne.s32.totalorder %s70, %s84
    %p86 = scmp.eq.s32.totalorder %s14, 0
    %p87 = por %p85, %p86
    %s88 = ssub.s32 %s15, %s34
    %s89 = ssub.s32 %s16, %s30
    %s90 = sor.u32 %s88, %s89
    %p91 = scmp.eq.s32.totalorder %s90, 0
    %s93 = sadd.s32 %s92, 1
    %s94 = scalar_select %p91, %s92, %s93
    %p97 = pneg %p91
    %p98 = scmp.eq.s32.totalorder %s8, 3
    %p99 = por %p97, %p98
    %p100 = scmp.ne.s32.totalorder %s92, %s95
    %p101 = scmp.eq.s32.totalorder %s8, 0
    %p102 = por %p100, %p101
    %p103 = scmp.ne.s32.totalorder %s92, %s95
    %p104 = scmp.eq.s32.totalorder %s13, 3
    %p105 = por %p103, %p104
    %p106 = scmp.ne.s32.totalorder %s95, %s96
    %p107 = scmp.eq.s32.totalorder %s13, 0
    %p108 = por %p106, %p107
    %p109 = scmp.ne.s32.totalorder %s95, %s96
    %p110 = scmp.eq.s32.totalorder %s14, 3
    %p111 = por %p109, %p110
    %p113 = scmp.ne.s32.totalorder %s96, %s112
    %p114 = scmp.eq.s32.totalorder %s14, 0
    %p115 = por %p113, %p114
    %p116 = scmp.le.s32.totalorder 1, %s8
    %p117 = scmp.lt.s32.totalorder %s8, 5
    %p118 = pnand %p116, %p117
    %p119 = pneg %p118
    // Predicated region
    $region9: #{mamba_1024_forward.1} parent=5 // pred_check
      _
    $region10: #{mamba_1024_forward.1} parent=5 // pred_check_branch
      %121 = sbr.rel (%p118) target = $region12
    $region11: #{mamba_1024_forward.1} parent=5 // pred_region
      %s122 = ssub.s32 %s8, 1
      // Predicated region
      $region13: #{mamba_1024_forward.1} parent=11 // pred_check
        %p123 = pneg %p80
      $region14: #{mamba_1024_forward.1} parent=11 // pred_check_branch
        %125 = sbr.rel (%p123) target = $region16
      $region15: #{mamba_1024_forward.1} parent=11 // pred_region
        _
      $region16: #{mamba_1024_forward.1} parent=11 // pred_fallthru
        _
    $region12: #{mamba_1024_forward.1} parent=5 // pred_fallthru
      _
    %p126 = scmp.lt.s32.totalorder %s8, 4
    // Predicated region
    $region17: #{mamba_1024_forward.1} parent=5 // pred_check
      %p127 = pneg %p126
    $region18: #{mamba_1024_forward.1} parent=5 // pred_check_branch
      %129 = sbr.rel (%p127) target = $region20
    $region19: #{mamba_1024_forward.1} parent=5 // pred_region
      // Predicated region
      $region21: #{mamba_1024_forward.1} parent=19 // pred_check
        %p130 = pneg %p53
      $region22: #{mamba_1024_forward.1} parent=19 // pred_check_branch
        %132 = sbr.rel (%p130) target = $region24
      $region23: #{mamba_1024_forward.1} parent=19 // pred_region
        %s133 = smul.u32 %s16, 2
        %s134 = sadd.s32 %s133, %s15
        %s135 = sadd.s32 %s134, %s17
        %s136 = smul.u32 2, %s135
        %p137 = scmp.lt.s32.totalorder %s136, 7
        %s138 = scalar_select %p137, %s136, 7
        %s139 = smul.addr %s138, 8
        %s140 = scalar_lea.vmem %s0, %s139
        %s141 = smul.u32 %s16, 2
        %s142 = sadd.s32 %s141, %s15
        %s143 = sadd.s32 %s142, %s17
        %s144 = smul.u32 2, %s143
      $region24: #{mamba_1024_forward.1} parent=19 // pred_fallthru
        _
    $region20: #{mamba_1024_forward.1} parent=5 // pred_fallthru
      _
    %p145 = scmp.le.s32.totalorder 1, %s8
    %p146 = scmp.lt.s32.totalorder %s8, 5
    %p147 = pnand %p145, %p146
    %p148 = pneg %p147
    // Predicated region
    $region25: #{mamba_1024_forward.1} parent=5 // pred_check
      _
    $region26: #{mamba_1024_forward.1} parent=5 // pred_check_branch
      %150 = sbr.rel (%p147) target = $region28
    $region27: #{mamba_1024_forward.1} parent=5 // pred_region
      %s151 = ssub.s32 %s8, 1
      %s152 = smul.u32 %s19, 2
      %s153 = sadd.s32 %s152, %s18
      %s154 = sadd.s32 %s153, %s20
      %s155 = smul.u32 2, %s154
      %p156 = scmp.lt.s32.totalorder %s155, 7
      %s157 = scalar_select %p156, %s155, 7
      %s158 = smul.addr %s157, 8
      %s159 = scalar_lea.vmem %s0, %s158
      %p160 = pneg %p59
      %p161 = pneg %p56
      %p162 = pneg %p80
      %p163 = pneg %p77
      %p164 = pneg %p108
      %p165 = pneg %p105
      %p166 = scmp.lt.s32.totalorder %s18, 1
      %s167 = scalar_select %p166, %s18, 1
      %p168 = scmp.lt.s32.totalorder %s19, 1
      %s169 = scalar_select %p168, %s19, 1
      %s170 = smul.addr %s169, 8
      %s171 = smul.addr %s167, 16
      %s172 = sadd.s32 %s170, %s171
      %s173 = scalar_lea.vmem %s2, %s172
      %s174 = smul.u32 %s19, 2
      %s175 = sadd.s32 %s174, %s18
      %s176 = sadd.s32 %s175, %s20
      %s177 = smul.u32 2, %s176
      %p178 = scmp.lt.s32.totalorder %s177, 7
      %s179 = scalar_select %p178, %s177, 7
      %s180 = smul.addr %s179, 8
      %s181 = scalar_lea.vmem %s0, %s180
      %s182 = smul.u32 %s19, 2
      %s183 = sadd.s32 %s182, %s18
      %s184 = sadd.s32 %s183, %s20
      %s185 = smul.u32 2, %s184
      %p186 = scmp.lt.s32.totalorder %s18, 1
      %s187 = scalar_select %p186, %s18, 1
      %p188 = scmp.lt.s32.totalorder %s19, 1
      %s189 = scalar_select %p188, %s19, 1
      %s190 = smul.addr %s189, 8
      %s191 = smul.addr %s187, 16
      %s192 = sadd.s32 %s190, %s191
      %s193 = scalar_lea.vmem %s2, %s192
      %p194 = scmp.eq.s32.totalorder %s20, 0
      // Predicated region
      $region29: #{mamba_1024_forward.1} parent=27 // pred_check
        %p195 = pneg %p194
      $region30: #{mamba_1024_forward.1} parent=27 // pred_check_branch
        %197 = sbr.rel (%p195) target = $region32
      $region31: #{mamba_1024_forward.1} parent=27 // pred_region
        %vm198 = vcmask 392192
        %199 = vst.msk [vmem:[#allocation2] sm:$0xff] %vm198, 0.0
      $region32: #{mamba_1024_forward.1} parent=27 // pred_fallthru
        _
      %v200 = vld [vmem:[%s181] sm:$0xff]
      %v201 = vld [vmem:[%s181 + $0x8] sm:$0xff]
      %v202 = vadd.f32 %v200, %v201
      %v203 = vld [vmem:[#allocation2] sm:$0xff]
      %v204 = vadd.f32 %v203, %v202
      %vm205 = vcmask 392192
      %206 = vst.msk [vmem:[#allocation2] sm:$0xff] %vm205, %v204
      // Predicated region
      $region33: #{mamba_1024_forward.1} parent=27 // pred_check
        %p207 = pneg %p194
      $region34: #{mamba_1024_forward.1} parent=27 // pred_check_branch
        %209 = sbr.rel (%p207) target = $region36
      $region35: #{mamba_1024_forward.1} parent=27 // pred_region
        %v210 = vld [vmem:[#allocation2] sm:$0xff]
        %v211 = vsel %vm205, %v210, 0.0
        %v212 = vrot.slane %v211, 4
        %v213 = vadd.f32 %v211, %v212
        %v214 = vrot.slane %v213, 2
        %v215 = vadd.f32 %v213, %v214
        %v216 = vrot.slane %v215, 1
        %v217 = vadd.f32 %v215, %v216
        %v218 = vld [vmem:[%s1] sm:$0xff]
        %v219 = vld [vmem:[%s1 + $0x8] sm:$0xff]
        %v220 = vld [vmem:[%s1 + $0x10] sm:$0xff]
        %v221 = vld [vmem:[%s1 + $0x18] sm:$0xff]
        %v222 = vld [vmem:[%s1 + $0x20] sm:$0xff]
        %v223 = vld [vmem:[%s1 + $0x28] sm:$0xff]
        %v224 = vld [vmem:[%s1 + $0x30] sm:$0xff]
        %v225 = vld [vmem:[%s1 + $0x38] sm:$0xff]
        %v226 = vld [vmem:[%s1 + $0x40] sm:$0xff]
        %v227 = vld [vmem:[%s1 + $0x48] sm:$0xff]
        %v228 = vld [vmem:[%s1 + $0x50] sm:$0xff]
        %v229 = vld [vmem:[%s1 + $0x58] sm:$0xff]
        %v230 = vld [vmem:[%s1 + $0x60] sm:$0xff]
        %v231 = vld [vmem:[%s1 + $0x68] sm:$0xff]
        %v232 = vld [vmem:[%s1 + $0x70] sm:$0xff]
        %v233 = vld [vmem:[%s1 + $0x78] sm:$0xff]
        %v234 = vld [vmem:[%s1 + $0x80] sm:$0xff]
        %v235 = vld [vmem:[%s1 + $0x88] sm:$0xff]
        %v236 = vld [vmem:[%s1 + $0x90] sm:$0xff]
        %v237 = vld [vmem:[%s1 + $0x98] sm:$0xff]
        %v238 = vld [vmem:[%s1 + $0xa0] sm:$0xff]
        %v239 = vld [vmem:[%s1 + $0xa8] sm:$0xff]
        %v240 = vld [vmem:[%s1 + $0xb0] sm:$0xff]
        %v241 = vld [vmem:[%s1 + $0xb8] sm:$0xff]
        %v242 = vld [vmem:[%s1 + $0xc0] sm:$0xff]
        %v243 = vld [vmem:[%s1 + $0xc8] sm:$0xff]
        %v244 = vld [vmem:[%s1 + $0xd0] sm:$0xff]
        %v245 = vld [vmem:[%s1 + $0xd8] sm:$0xff]
        %v246 = vld [vmem:[%s1 + $0xe0] sm:$0xff]
        %v247 = vld [vmem:[%s1 + $0xe8] sm:$0xff]
        %v248 = vld [vmem:[%s1 + $0xf0] sm:$0xff]
        %v249 = vld [vmem:[%s1 + $0xf8] sm:$0xff]
        %v250 = vld [vmem:[%s1 + $0x100] sm:$0xff]
        %v251 = vld [vmem:[%s1 + $0x108] sm:$0xff]
        %v252 = vld [vmem:[%s1 + $0x110] sm:$0xff]
        %v253 = vld [vmem:[%s1 + $0x118] sm:$0xff]
        %v254 = vld [vmem:[%s1 + $0x120] sm:$0xff]
        %v255 = vld [vmem:[%s1 + $0x128] sm:$0xff]
        %v256 = vld [vmem:[%s1 + $0x130] sm:$0xff]
        %v257 = vld [vmem:[%s1 + $0x138] sm:$0xff]
        %v258 = vld [vmem:[%s1 + $0x140] sm:$0xff]
        %v259 = vld [vmem:[%s1 + $0x148] sm:$0xff]
        %v260 = vld [vmem:[%s1 + $0x150] sm:$0xff]
        %v261 = vld [vmem:[%s1 + $0x158] sm:$0xff]
        %v262 = vld [vmem:[%s1 + $0x160] sm:$0xff]
        %v263 = vld [vmem:[%s1 + $0x168] sm:$0xff]
        %v264 = vld [vmem:[%s1 + $0x170] sm:$0xff]
        %v265 = vld [vmem:[%s1 + $0x178] sm:$0xff]
        %v267 = vsel %vm205, %v217, 0
        %269 = vmatprep.subr.mxu0 0.0
        %270 = vmatpush1.msra.mxu0 0.0
        %271 = vmatprep.subr.mxu0 0.0
        %272 = vmatpush1.msra.mxu0 0.0
        %273 = vmatprep.subr.mxu0 0.0
        %274 = vmatpush1.msra.mxu0 0.0
        %275 = vmatprep.subr.mxu0 0.0
        %276 = vmatpush1.msra.mxu0 0.0
        %277 = vmatprep.subr.mxu0 0.0
        %278 = vmatpush1.msra.mxu0 0.0
        %279 = vmatprep.subr.mxu0 0.0
        %280 = vmatpush1.msra.mxu0 0.0
        %281 = vmatprep.subr.mxu0 0.0
        %282 = vmatpush1.msra.mxu0 0.0
        %283 = vmatprep.subr.mxu0 0.0
        %284 = vmatpush1.msra.mxu0 0.0
        %285 = vmatprep.subr.mxu0 0.0
        %286 = vmatpush1.msra.mxu0 0.0
        %287 = vmatprep.subr.mxu0 0.0
        %288 = vmatpush1.msra.mxu0 0.0
        %289 = vmatprep.subr.mxu0 %v259
        %290 = vmatpush1.msra.mxu0 %v258
        %291 = vmatprep.subr.mxu0 %v251
        %292 = vmatpush1.msra.mxu0 %v250
        %293 = vmatprep.subr.mxu0 %v243
        %294 = vmatpush1.msra.mxu0 %v242
        %295 = vmatprep.subr.mxu0 %v235
        %296 = vmatpush1.msra.mxu0 %v234
        %297 = vmatprep.subr.mxu0 %v227
        %298 = vmatpush1.msra.mxu0 %v226
        %299 = vmatprep.subr.mxu0 %v219
        %300 = vmatpush1.msra.mxu0 %v218
        %301 = vmatprep.subr.mxu0 0.0
        %302 = vmatpush2.msra.mxu0 0.0
        %303 = vmatprep.subr.mxu0 0.0
        %304 = vmatpush2.msra.mxu0 0.0
        %305 = vmatprep.subr.mxu0 0.0
        %306 = vmatpush2.msra.mxu0 0.0
        %307 = vmatprep.subr.mxu0 0.0
        %308 = vmatpush2.msra.mxu0 0.0
        %309 = vmatprep.subr.mxu0 0.0
        %310 = vmatpush2.msra.mxu0 0.0
        %311 = vmatprep.subr.mxu0 0.0
        %312 = vmatpush2.msra.mxu0 0.0
        %313 = vmatprep.subr.mxu0 0.0
        %314 = vmatpush2.msra.mxu0 0.0
        %315 = vmatprep.subr.mxu0 0.0
        %316 = vmatpush2.msra.mxu0 0.0
        %317 = vmatprep.subr.mxu0 0.0
        %318 = vmatpush2.msra.mxu0 0.0
        %319 = vmatprep.subr.mxu0 0.0
        %320 = vmatpush2.msra.mxu0 0.0
        %321 = vmatprep.subr.mxu0 0.0
        %322 = vmatpush2.msra.mxu0 0.0
        %323 = vmatprep.subr.mxu0 0.0
        %324 = vmatpush2.msra.mxu0 0.0
        %325 = vmatprep.subr.mxu0 0.0
        %326 = vmatpush2.msra.mxu0 0.0
        %327 = vmatprep.subr.mxu0 0.0
        %328 = vmatpush2.msra.mxu0 0.0
        %329 = vmatprep.subr.mxu0 0.0
        %330 = vmatpush2.msra.mxu0 0.0
        %331 = vmatprep.subr.mxu0 0.0
        %332 = vmatpush2.msra.mxu0 0.0
        %333 = vmatprep.mubr.f32.mxu0 0.0
        %334 = vmatmul.mubr.f32.gmra.mxu0 %v267
        %v335 = vpop.f32.mrf.mxu0
        %v336 = vadd.f32 0.0, %v335
        %v337 = vpop.f32.mrf.mxu0
        %v338 = vadd.f32 0.0, %v337
        %339 = vdwg.mxu0
        %340 = vmatprep.subr.mxu0 0.0
        %341 = vmatpush1.msra.mxu0 0.0
        %342 = vmatprep.subr.mxu0 0.0
        %343 = vmatpush1.msra.mxu0 0.0
        %344 = vmatprep.subr.mxu0 0.0
        %345 = vmatpush1.msra.mxu0 0.0
        %346 = vmatprep.subr.mxu0 0.0
        %347 = vmatpush1.msra.mxu0 0.0
        %348 = vmatprep.subr.mxu0 0.0
        %349 = vmatpush1.msra.mxu0 0.0
        %350 = vmatprep.subr.mxu0 0.0
        %351 = vmatpush1.msra.mxu0 0.0
        %352 = vmatprep.subr.mxu0 0.0
        %353 = vmatpush1.msra.mxu0 0.0
        %354 = vmatprep.subr.mxu0 0.0
        %355 = vmatpush1.msra.mxu0 0.0
        %356 = vmatprep.subr.mxu0 0.0
        %357 = vmatpush1.msra.mxu0 0.0
        %358 = vmatprep.subr.mxu0 0.0
        %359 = vmatpush1.msra.mxu0 0.0
        %360 = vmatprep.subr.mxu0 %v261
        %361 = vmatpush1.msra.mxu0 %v260
        %362 = vmatprep.subr.mxu0 %v253
        %363 = vmatpush1.msra.mxu0 %v252
        %364 = vmatprep.subr.mxu0 %v245
        %365 = vmatpush1.msra.mxu0 %v244
        %366 = vmatprep.subr.mxu0 %v237
        %367 = vmatpush1.msra.mxu0 %v236
        %368 = vmatprep.subr.mxu0 %v229
        %369 = vmatpush1.msra.mxu0 %v228
        %370 = vmatprep.subr.mxu0 %v221
        %371 = vmatpush1.msra.mxu0 %v220
        %372 = vmatprep.subr.mxu0 0.0
        %373 = vmatpush2.msra.mxu0 0.0
        %374 = vmatprep.subr.mxu0 0.0
        %375 = vmatpush2.msra.mxu0 0.0
        %376 = vmatprep.subr.mxu0 0.0
        %377 = vmatpush2.msra.mxu0 0.0
        %378 = vmatprep.subr.mxu0 0.0
        %379 = vmatpush2.msra.mxu0 0.0
        %380 = vmatprep.subr.mxu0 0.0
        %381 = vmatpush2.msra.mxu0 0.0
        %382 = vmatprep.subr.mxu0 0.0
        %383 = vmatpush2.msra.mxu0 0.0
        %384 = vmatprep.subr.mxu0 0.0
        %385 = vmatpush2.msra.mxu0 0.0
        %386 = vmatprep.subr.mxu0 0.0
        %387 = vmatpush2.msra.mxu0 0.0
        %388 = vmatprep.subr.mxu0 0.0
        %389 = vmatpush2.msra.mxu0 0.0
        %390 = vmatprep.subr.mxu0 0.0
        %391 = vmatpush2.msra.mxu0 0.0
        %392 = vmatprep.subr.mxu0 0.0
        %393 = vmatpush2.msra.mxu0 0.0
        %394 = vmatprep.subr.mxu0 0.0
        %395 = vmatpush2.msra.mxu0 0.0
        %396 = vmatprep.subr.mxu0 0.0
        %397 = vmatpush2.msra.mxu0 0.0
        %398 = vmatprep.subr.mxu0 0.0
        %399 = vmatpush2.msra.mxu0 0.0
        %400 = vmatprep.subr.mxu0 0.0
        %401 = vmatpush2.msra.mxu0 0.0
        %402 = vmatprep.subr.mxu0 0.0
        %403 = vmatpush2.msra.mxu0 0.0
        %404 = vmatprep.mubr.f32.mxu0 0.0
        %405 = vmatmul.mubr.f32.gmra.mxu0 %v267
        %v406 = vpop.f32.mrf.mxu0
        %v407 = vadd.f32 0.0, %v406
        %v408 = vpop.f32.mrf.mxu0
        %v409 = vadd.f32 0.0, %v408
        %410 = vdwg.mxu0
        %411 = vmatprep.subr.mxu0 0.0
        %412 = vmatpush1.msra.mxu0 0.0
        %413 = vmatprep.subr.mxu0 0.0
        %414 = vmatpush1.msra.mxu0 0.0
        %415 = vmatprep.subr.mxu0 0.0
        %416 = vmatpush1.msra.mxu0 0.0
        %417 = vmatprep.subr.mxu0 0.0
        %418 = vmatpush1.msra.mxu0 0.0
        %419 = vmatprep.subr.mxu0 0.0
        %420 = vmatpush1.msra.mxu0 0.0
        %421 = vmatprep.subr.mxu0 0.0
        %422 = vmatpush1.msra.mxu0 0.0
        %423 = vmatprep.subr.mxu0 0.0
        %424 = vmatpush1.msra.mxu0 0.0
        %425 = vmatprep.subr.mxu0 0.0
        %426 = vmatpush1.msra.mxu0 0.0
        %427 = vmatprep.subr.mxu0 0.0
        %428 = vmatpush1.msra.mxu0 0.0
        %429 = vmatprep.subr.mxu0 0.0
        %430 = vmatpush1.msra.mxu0 0.0
        %431 = vmatprep.subr.mxu0 %v263
        %432 = vmatpush1.msra.mxu0 %v262
        %433 = vmatprep.subr.mxu0 %v255
        %434 = vmatpush1.msra.mxu0 %v254
        %435 = vmatprep.subr.mxu0 %v247
        %436 = vmatpush1.msra.mxu0 %v246
        %437 = vmatprep.subr.mxu0 %v239
        %438 = vmatpush1.msra.mxu0 %v238
        %439 = vmatprep.subr.mxu0 %v231
        %440 = vmatpush1.msra.mxu0 %v230
        %441 = vmatprep.subr.mxu0 %v223
        %442 = vmatpush1.msra.mxu0 %v222
        %443 = vmatprep.subr.mxu0 0.0
        %444 = vmatpush2.msra.mxu0 0.0
        %445 = vmatprep.subr.mxu0 0.0
        %446 = vmatpush2.msra.mxu0 0.0
        %447 = vmatprep.subr.mxu0 0.0
        %448 = vmatpush2.msra.mxu0 0.0
        %449 = vmatprep.subr.mxu0 0.0
        %450 = vmatpush2.msra.mxu0 0.0
        %451 = vmatprep.subr.mxu0 0.0
        %452 = vmatpush2.msra.mxu0 0.0
        %453 = vmatprep.subr.mxu0 0.0
        %454 = vmatpush2.msra.mxu0 0.0
        %455 = vmatprep.subr.mxu0 0.0
        %456 = vmatpush2.msra.mxu0 0.0
        %457 = vmatprep.subr.mxu0 0.0
        %458 = vmatpush2.msra.mxu0 0.0
        %459 = vmatprep.subr.mxu0 0.0
        %460 = vmatpush2.msra.mxu0 0.0
        %461 = vmatprep.subr.mxu0 0.0
        %462 = vmatpush2.msra.mxu0 0.0
        %463 = vmatprep.subr.mxu0 0.0
        %464 = vmatpush2.msra.mxu0 0.0
        %465 = vmatprep.subr.mxu0 0.0
        %466 = vmatpush2.msra.mxu0 0.0
        %467 = vmatprep.subr.mxu0 0.0
        %468 = vmatpush2.msra.mxu0 0.0
        %469 = vmatprep.subr.mxu0 0.0
        %470 = vmatpush2.msra.mxu0 0.0
        %471 = vmatprep.subr.mxu0 0.0
        %472 = vmatpush2.msra.mxu0 0.0
        %473 = vmatprep.subr.mxu0 0.0
        %474 = vmatpush2.msra.mxu0 0.0
        %475 = vmatprep.mubr.f32.mxu0 0.0
        %476 = vmatmul.mubr.f32.gmra.mxu0 %v267
        %v477 = vpop.f32.mrf.mxu0
        %v478 = vadd.f32 0.0, %v477
        %v479 = vpop.f32.mrf.mxu0
        %v480 = vadd.f32 0.0, %v479
        %481 = vdwg.mxu0
        %482 = vmatprep.subr.mxu0 0.0
        %483 = vmatpush1.msra.mxu0 0.0
        %484 = vmatprep.subr.mxu0 0.0
        %485 = vmatpush1.msra.mxu0 0.0
        %486 = vmatprep.subr.mxu0 0.0
        %487 = vmatpush1.msra.mxu0 0.0
        %488 = vmatprep.subr.mxu0 0.0
        %489 = vmatpush1.msra.mxu0 0.0
        %490 = vmatprep.subr.mxu0 0.0
        %491 = vmatpush1.msra.mxu0 0.0
        %492 = vmatprep.subr.mxu0 0.0
        %493 = vmatpush1.msra.mxu0 0.0
        %494 = vmatprep.subr.mxu0 0.0
        %495 = vmatpush1.msra.mxu0 0.0
        %496 = vmatprep.subr.mxu0 0.0
        %497 = vmatpush1.msra.mxu0 0.0
        %498 = vmatprep.subr.mxu0 0.0
        %499 = vmatpush1.msra.mxu0 0.0
        %500 = vmatprep.subr.mxu0 0.0
        %501 = vmatpush1.msra.mxu0 0.0
        %502 = vmatprep.subr.mxu0 %v265
        %503 = vmatpush1.msra.mxu0 %v264
        %504 = vmatprep.subr.mxu0 %v257
        %505 = vmatpush1.msra.mxu0 %v256
        %506 = vmatprep.subr.mxu0 %v249
        %507 = vmatpush1.msra.mxu0 %v248
        %508 = vmatprep.subr.mxu0 %v241
        %509 = vmatpush1.msra.mxu0 %v240
        %510 = vmatprep.subr.mxu0 %v233
        %511 = vmatpush1.msra.mxu0 %v232
        %512 = vmatprep.subr.mxu0 %v225
        %513 = vmatpush1.msra.mxu0 %v224
        %514 = vmatprep.subr.mxu0 0.0
        %515 = vmatpush2.msra.mxu0 0.0
        %516 = vmatprep.subr.mxu0 0.0
        %517 = vmatpush2.msra.mxu0 0.0
        %518 = vmatprep.subr.mxu0 0.0
        %519 = vmatpush2.msra.mxu0 0.0
        %520 = vmatprep.subr.mxu0 0.0
        %521 = vmatpush2.msra.mxu0 0.0
        %522 = vmatprep.subr.mxu0 0.0
        %523 = vmatpush2.msra.mxu0 0.0
        %524 = vmatprep.subr.mxu0 0.0
        %525 = vmatpush2.msra.mxu0 0.0
        %526 = vmatprep.subr.mxu0 0.0
        %527 = vmatpush2.msra.mxu0 0.0
        %528 = vmatprep.subr.mxu0 0.0
        %529 = vmatpush2.msra.mxu0 0.0
        %530 = vmatprep.subr.mxu0 0.0
        %531 = vmatpush2.msra.mxu0 0.0
        %532 = vmatprep.subr.mxu0 0.0
        %533 = vmatpush2.msra.mxu0 0.0
        %534 = vmatprep.subr.mxu0 0.0
        %535 = vmatpush2.msra.mxu0 0.0
        %536 = vmatprep.subr.mxu0 0.0
        %537 = vmatpush2.msra.mxu0 0.0
        %538 = vmatprep.subr.mxu0 0.0
        %539 = vmatpush2.msra.mxu0 0.0
        %540 = vmatprep.subr.mxu0 0.0
        %541 = vmatpush2.msra.mxu0 0.0
        %542 = vmatprep.subr.mxu0 0.0
        %543 = vmatpush2.msra.mxu0 0.0
        %544 = vmatprep.subr.mxu0 0.0
        %545 = vmatpush2.msra.mxu0 0.0
        %546 = vmatprep.mubr.f32.mxu0 0.0
        %547 = vmatmul.mubr.f32.gmra.mxu0 %v267
        %v548 = vpop.f32.mrf.mxu0
        %v549 = vadd.f32 0.0, %v548
        %v550 = vpop.f32.mrf.mxu0
        %v551 = vadd.f32 0.0, %v550
        %552 = vdwg.mxu0
        %v561 = vcombine.low %v336, %v338
        %v562 = vcombine.low %v407, %v409
        %v563 = vcombine.low %v478, %v480
        %v564 = vcombine.low %v549, %v551
        %v566 = vunpack.c.l.s4 1966171168
        %v567 = vunpack.c.0.s8 %v566
        %v568 = vlaneseq
        %v569 = vshrl.u32 %v568, 7
        %v570 = vsub.s32 %v567, %v569
        %v571 = vrot.slane %v561, %v570
        %v573 = vunpack.c.l.s4 1966171168
        %v574 = vunpack.c.0.s8 %v573
        %v575 = vlaneseq
        %v576 = vshrl.u32 %v575, 7
        %v577 = vsub.s32 %v574, %v576
        %v578 = vrot.slane %v562, %v577
        %v580 = vunpack.c.l.s4 1966171168
        %v581 = vunpack.c.0.s8 %v580
        %v582 = vlaneseq
        %v583 = vshrl.u32 %v582, 7
        %v584 = vsub.s32 %v581, %v583
        %v585 = vrot.slane %v563, %v584
        %v587 = vunpack.c.l.s4 1966171168
        %v588 = vunpack.c.0.s8 %v587
        %v589 = vlaneseq
        %v590 = vshrl.u32 %v589, 7
        %v591 = vsub.s32 %v588, %v590
        %v592 = vrot.slane %v564, %v591
        %v593 = vcombine.low %v571, %v578
        %v594 = vcombine.low %v585, %v592
        %v596 = vunpack.c.l.s4 1966171168
        %v597 = vunpack.c.0.s8 %v596
        %v598 = vlaneseq
        %v599 = vshrl.u32 %v598, 7
        %v600 = vsub.s32 %v597, %v599
        %v601 = vrot.slane %v593, %v600
        %v603 = vunpack.c.l.s4 1966171168
        %v604 = vunpack.c.0.s8 %v603
        %v605 = vlaneseq
        %v606 = vshrl.u32 %v605, 7
        %v607 = vsub.s32 %v604, %v606
        %v608 = vrot.slane %v594, %v607
        %v609 = vcombine.low %v601, %v608
        %611 = vst [vmem:[%s193] sm:$0xff] %v609
      $region36: #{mamba_1024_forward.1} parent=27 // pred_fallthru
        _
      %p612 = scmp.lt.s32.totalorder %s18, 1
      %s613 = scalar_select %p612, %s18, 1
      %p614 = scmp.lt.s32.totalorder %s19, 1
      %s615 = scalar_select %p614, %s19, 1
      %s616 = smul.addr %s615, 8
      %s617 = smul.addr %s613, 16
      %s618 = sadd.s32 %s616, %s617
      %s619 = scalar_lea.vmem %s2, %s618
      // Predicated region
      $region37: #{mamba_1024_forward.1} parent=27 // pred_check
        %p620 = pneg %p105
      $region38: #{mamba_1024_forward.1} parent=27 // pred_check_branch
        %622 = sbr.rel (%p620) target = $region40
      $region39: #{mamba_1024_forward.1} parent=27 // pred_region
        _
      $region40: #{mamba_1024_forward.1} parent=27 // pred_fallthru
        _
    $region28: #{mamba_1024_forward.1} parent=5 // pred_fallthru
      _
    %p623 = scmp.le.s32.totalorder 2, %s8
    // Predicated region
    $region41: #{mamba_1024_forward.1} parent=5 // pred_check
      %p624 = pneg %p623
    $region42: #{mamba_1024_forward.1} parent=5 // pred_check_branch
      %626 = sbr.rel (%p624) target = $region44
    $region43: #{mamba_1024_forward.1} parent=5 // pred_region
      %s627 = ssub.s32 %s8, 2
      // Predicated region
      $region45: #{mamba_1024_forward.1} parent=43 // pred_check
        %p628 = pneg %p111
      $region46: #{mamba_1024_forward.1} parent=43 // pred_check_branch
        %630 = sbr.rel (%p628) target = $region48
      $region47: #{mamba_1024_forward.1} parent=43 // pred_region
        %p631 = scmp.lt.s32.totalorder %s21, 1
        %s632 = scalar_select %p631, %s21, 1
        %p633 = scmp.lt.s32.totalorder %s22, 1
        %s634 = scalar_select %p633, %s22, 1
        %s635 = smul.addr %s634, 8
        %s636 = smul.addr %s632, 16
        %s637 = sadd.s32 %s635, %s636
        %s638 = scalar_lea.vmem %s2, %s637
      $region48: #{mamba_1024_forward.1} parent=43 // pred_fallthru
        _
    $region44: #{mamba_1024_forward.1} parent=5 // pred_fallthru
      _
  $region6: #{mamba_1024_forward.1} parent=0 // loop_footer
    %s12 = sadd.s32 1, %s8
  $region7: #{mamba_1024_forward.1} parent=0 // loop_footer_branch
    %7 = sbr.rel target = $region3
  $region8: #{mamba_1024_forward.1} parent=0 // loop_exit
    _

</llo_original>
